<compile_context>
chip_gen: v5e
topology: v5e:2x2
jax: 0.10.0
libtpu: 0.0.40
codegen_flags: <defaults>
</compile_context>

<pallas_src>
import jax
import jax.numpy as jnp
from jax.experimental import pallas as pl
from jax.experimental.pallas import tpu as pltpu

# Large negative finite init for the running max (avoids inf-inf NaNs in the
# lane-wise online-softmax rescale).
_NEG_INIT = -1e30


def _pick_tile(total, desired, quantum):
    """Largest tile <= desired that is a multiple of `quantum` and divides
    `total` exactly; falls back to the full dimension (always legal)."""
    if total <= desired:
        return total
    t = (desired // quantum) * quantum
    while t >= quantum:
        if total % t == 0:
            return t
        t -= quantum
    return total


def _make_ce_kernel_lanes(tn, tc):
    """Lane-accumulator path. Requires tc % 128 == 0 (the common case)."""
    k_slices = tc // 128

    def kernel(logits_ref, tgt_ref, loss_ref, m_acc, l_acc, t_acc):
        c_idx = pl.program_id(1)
        n_c = pl.num_programs(1)

        @pl.when(c_idx == 0)
        def _init():
            m_acc[...] = jnp.full((tn, 128), _NEG_INIT, jnp.float32)
            l_acc[...] = jnp.zeros((tn, 128), jnp.float32)
            t_acc[...] = jnp.zeros((tn, 128), jnp.float32)

        x = logits_ref[...].astype(jnp.float32)          # (tn, tc)
        tgt_rel = tgt_ref[...] - c_idx * tc              # (tn, 1) tile-relative

        # Static lane-aligned (tn, 128) slices: all per-tile work is VPU/EUP;
        # the 128->1 cross-lane XLU reduce happens once, in the finalize step.
        slices = [x[:, k * 128:(k + 1) * 128] for k in range(k_slices)]

        tile_max = slices[0]
        for s in slices[1:]:
            tile_max = jnp.maximum(tile_max, s)
        m_old = m_acc[...]
        m_new = jnp.maximum(m_old, tile_max)
        alpha = jnp.exp(m_old - m_new)

        p_sum = jnp.exp(slices[0] - m_new)
        for s in slices[1:]:
            p_sum = p_sum + jnp.exp(s - m_new)

        l_acc[...] = l_acc[...] * alpha + p_sum
        m_acc[...] = m_new

        # Target-logit gather: each class index hits exactly one (slice, lane)
        # across the whole C sweep, so the masked lane accumulator ends up
        # holding exactly the target logit.
        lane_iota = jax.lax.broadcasted_iota(jnp.int32, (tn, 128), 1)
        t_hit = jnp.zeros((tn, 128), jnp.float32)
        for k, s in enumerate(slices):
            hit = lane_iota == (tgt_rel - k * 128)
            t_hit = t_hit + jnp.where(hit, s, 0.0)
        t_acc[...] = t_acc[...] + t_hit

        @pl.when(c_idx == n_c - 1)
        def _finalize():
            m_row = jnp.max(m_acc[...], axis=-1, keepdims=True)          # (tn,1)
            l_row = jnp.sum(l_acc[...] * jnp.exp(m_acc[...] - m_row),
                            axis=-1, keepdims=True)                      # (tn,1)
            lse = m_row + jnp.log(l_row)
            tgt_logit = jnp.sum(t_acc[...], axis=-1, keepdims=True)      # (tn,1)
            loss_ref[...] = lse - tgt_logit

    return kernel


def _make_ce_kernel_simple(tn, tc):
    """Fallback path (per-tile lane reduce) for C tiles not a multiple of 128."""

    def kernel(logits_ref, tgt_ref, loss_ref, m_acc, l_acc, t_acc):
        c_idx = pl.program_id(1)
        n_c = pl.num_programs(1)

        @pl.when(c_idx == 0)
        def _init():
            m_acc[...] = jnp.full((tn, 1), _NEG_INIT, jnp.float32)
            l_acc[...] = jnp.zeros((tn, 1), jnp.float32)
            t_acc[...] = jnp.zeros((tn, 1), jnp.float32)

        x = logits_ref[...].astype(jnp.float32)          # (tn, tc)
        tgt_rel = tgt_ref[...] - c_idx * tc              # (tn, 1)

        m_old = m_acc[...]
        m_new = jnp.maximum(m_old, jnp.max(x, axis=-1, keepdims=True))
        alpha = jnp.exp(m_old - m_new)
        p = jnp.exp(x - m_new)
        l_acc[...] = l_acc[...] * alpha + jnp.sum(p, axis=-1, keepdims=True)
        m_acc[...] = m_new

        col = jax.lax.broadcasted_iota(jnp.int32, x.shape, 1)
        t_acc[...] = t_acc[...] + jnp.sum(
            jnp.where(col == tgt_rel, x, 0.0), axis=-1, keepdims=True)

        @pl.when(c_idx == n_c - 1)
        def _finalize():
            loss_ref[...] = (m_acc[...] + jnp.log(l_acc[...])) - t_acc[...]

    return kernel


def shared_embedding_xentropy_loss(P, outputs, targets, param_lambda=0.15,
                                   *, tn=256, tc=2048):
    """P: (H, H); outputs: (N, C) logits (f32 or bf16); targets: (N,) int."""
    n, c = outputs.shape
    h, h2 = P.shape
    assert h == h2

    TN = _pick_tile(n, tn, 8)
    TC = _pick_tile(c, tc, 128)
    grid = (n // TN, c // TC)

    targets_2d = targets.astype(jnp.int32).reshape(n, 1)

    if TC % 128 == 0:
        kernel = _make_ce_kernel_lanes(TN, TC)
        acc_shape = (TN, 128)
    else:
        kernel = _make_ce_kernel_simple(TN, TC)
        acc_shape = (TN, 1)

    itemsize = jnp.dtype(outputs.dtype).itemsize
    cost = pl.CostEstimate(
        flops=6 * n * c,
        transcendentals=n * c,
        bytes_accessed=n * c * itemsize + n * 4 + n * 4,
    )

    per_row = pl.pallas_call(
        kernel,
        out_shape=jax.ShapeDtypeStruct((n, 1), jnp.float32),
        grid_spec=pltpu.PrefetchScalarGridSpec(
            num_scalar_prefetch=0,
            grid=grid,
            in_specs=[
                pl.BlockSpec((TN, TC), lambda ni, ci: (ni, ci)),   # logits tile
                pl.BlockSpec((TN, 1), lambda ni, ci: (ni, 0)),     # targets tile
            ],
            out_specs=pl.BlockSpec((TN, 1), lambda ni, ci: (ni, 0)),
            scratch_shapes=[pltpu.VMEM(acc_shape, jnp.float32)] * 3,
        ),
        compiler_params=pltpu.CompilerParams(
            dimension_semantics=("parallel", "arbitrary")),
        cost_estimate=cost,
    )(outputs, targets_2d)

    ce = jnp.mean(per_row)                                   # mean over N
    # Frobenius norm of P (torch .norm() default), done in XLA per perf review.
    reg = jnp.float32(param_lambda) * jnp.sqrt(
        jnp.sum(jnp.square(P.astype(jnp.float32))))
    return ce + reg


if __name__ == "__main__":
    key = jax.random.PRNGKey(0)
    k1, k2, k3 = jax.random.split(key, 3)

    N, C, H = 16, 512, 32
    outputs = jax.random.normal(k1, (N, C), dtype=jnp.float32)
    targets = jax.random.randint(k2, (N,), 0, C, dtype=jnp.int32)
    P = jax.random.normal(k3, (H, H), dtype=jnp.float32)

    def ref_loss(P, outputs, targets, lam=0.15):
        o = outputs.astype(jnp.float32)
        lse = jax.nn.logsumexp(o, axis=-1)
        tgt_logit = jnp.take_along_axis(
            o, targets.astype(jnp.int32)[:, None], axis=-1)[:, 0]
        return jnp.mean(lse - tgt_logit) + lam * jnp.sqrt(
            jnp.sum(jnp.square(P.astype(jnp.float32))))

    # 1) Small explicit tiles -> 2x4 grid; exercises the online-LSE
    #    accumulation across multiple C tiles and multiple N tiles.
    loss1 = jax.block_until_ready(
        shared_embedding_xentropy_loss(P, outputs, targets, 0.15, tn=8, tc=128))
    assert jnp.allclose(loss1, ref_loss(P, outputs, targets),
                        rtol=1e-4, atol=1e-4), (loss1, ref_loss(P, outputs, targets))

    # 2) Default (production) tile sizes -> single block at these toy shapes.
    loss2 = jax.block_until_ready(
        shared_embedding_xentropy_loss(P, outputs, targets, 0.15))
    assert jnp.allclose(loss2, ref_loss(P, outputs, targets),
                        rtol=1e-4, atol=1e-4), (loss2, ref_loss(P, outputs, targets))

    # 3) Class dim not a multiple of 128 -> simple fallback path.
    C3 = 192
    o3 = jax.random.normal(k1, (8, C3), dtype=jnp.float32)
    t3 = jax.random.randint(k2, (8,), 0, C3, dtype=jnp.int32)
    loss3 = jax.block_until_ready(
        shared_embedding_xentropy_loss(P, o3, t3, 0.15))
    assert jnp.allclose(loss3, ref_loss(P, o3, t3),
                        rtol=1e-4, atol=1e-4), (loss3, ref_loss(P, o3, t3))

    print("KERNEL_OK")
</pallas_src>

<mosaic_0001>
module attributes {stable_mosaic.version = 11 : i64} {
  func.func @kernel(%arg0: i32, %arg1: i32, %arg2: memref<8x128xf32, #tpu.memory_space<vmem>>, %arg3: memref<8x1xi32, #tpu.memory_space<vmem>>, %arg4: memref<8x1xf32, #tpu.memory_space<vmem>>, %arg5: memref<8x128xf32, #tpu.memory_space<vmem>>, %arg6: memref<8x128xf32, #tpu.memory_space<vmem>>, %arg7: memref<8x128xf32, #tpu.memory_space<vmem>>) attributes {dimension_semantics = [#tpu.dimension_semantics<parallel>, #tpu.dimension_semantics<arbitrary>], iteration_bounds = array<i64: 2, 4>, scalar_prefetch = 0 : i64, scratch_operands = 3 : i64, tpu.core_type = #tpu.core_type<tc>, window_params = [{transform_indices = @transform_0, window_bounds = array<i64: 8, 128>}, {transform_indices = @transform_1, window_bounds = array<i64: 8, 1>}, {transform_indices = @transform_2, window_bounds = array<i64: 8, 1>}]} {
    %c0_i32 = arith.constant 0 : i32
    %0 = arith.cmpi eq, %arg1, %c0_i32 : i32
    %1 = arith.extui %0 : i1 to i32
    %c0_i32_0 = arith.constant 0 : i32
    %2 = arith.cmpi ne, %1, %c0_i32_0 : i32
    scf.if %2 {
      %cst_19 = arith.constant -1.000000e+30 : f32
      %34 = vector.broadcast %cst_19 : f32 to vector<8x128xf32>
      %c0_20 = arith.constant 0 : index
      %c0_21 = arith.constant 0 : index
      %35 = vector.load %arg5[%c0_20, %c0_21] : memref<8x128xf32, #tpu.memory_space<vmem>>, vector<8x128xf32>
      tpu.vector_store %arg5[%c0_20, %c0_21], %34 {strides = array<i32>} : memref<8x128xf32, #tpu.memory_space<vmem>>, vector<8x128xf32>,
      %cst_22 = arith.constant 0.000000e+00 : f32
      %36 = vector.broadcast %cst_22 : f32 to vector<8x128xf32>
      %c0_23 = arith.constant 0 : index
      %c0_24 = arith.constant 0 : index
      %37 = vector.load %arg6[%c0_23, %c0_24] : memref<8x128xf32, #tpu.memory_space<vmem>>, vector<8x128xf32>
      tpu.vector_store %arg6[%c0_23, %c0_24], %36 {strides = array<i32>} : memref<8x128xf32, #tpu.memory_space<vmem>>, vector<8x128xf32>,
      %cst_25 = arith.constant 0.000000e+00 : f32
      %38 = vector.broadcast %cst_25 : f32 to vector<8x128xf32>
      %c0_26 = arith.constant 0 : index
      %c0_27 = arith.constant 0 : index
      %39 = vector.load %arg7[%c0_26, %c0_27] : memref<8x128xf32, #tpu.memory_space<vmem>>, vector<8x128xf32>
      tpu.vector_store %arg7[%c0_26, %c0_27], %38 {strides = array<i32>} : memref<8x128xf32, #tpu.memory_space<vmem>>, vector<8x128xf32>,
    } else {
    }
    %c0 = arith.constant 0 : index
    %c0_1 = arith.constant 0 : index
    %3 = vector.load %arg2[%c0, %c0_1] : memref<8x128xf32, #tpu.memory_space<vmem>>, vector<8x128xf32>
    %c0_2 = arith.constant 0 : index
    %c0_3 = arith.constant 0 : index
    %4 = vector.load %arg3[%c0_2, %c0_3] : memref<8x1xi32, #tpu.memory_space<vmem>>, vector<8x1xi32>
    %c128_i32 = arith.constant 128 : i32
    %5 = arith.muli %arg1, %c128_i32 : i32
    %6 = vector.broadcast %5 : i32 to vector<8x1xi32>
    %7 = arith.subi %4, %6 : vector<8x1xi32>
    %c0_4 = arith.constant 0 : index
    %c0_5 = arith.constant 0 : index
    %8 = vector.load %arg5[%c0_4, %c0_5] : memref<8x128xf32, #tpu.memory_space<vmem>>, vector<8x128xf32>
    %9 = arith.maximumf %8, %3 : vector<8x128xf32>
    %10 = arith.subf %8, %9 : vector<8x128xf32>
    %11 = math.exp %10 : vector<8x128xf32>
    %12 = arith.subf %3, %9 : vector<8x128xf32>
    %13 = math.exp %12 : vector<8x128xf32>
    %c0_6 = arith.constant 0 : index
    %c0_7 = arith.constant 0 : index
    %14 = vector.load %arg6[%c0_6, %c0_7] : memref<8x128xf32, #tpu.memory_space<vmem>>, vector<8x128xf32>
    %15 = arith.mulf %14, %11 : vector<8x128xf32>
    %16 = arith.addf %15, %13 : vector<8x128xf32>
    %c0_8 = arith.constant 0 : index
    %c0_9 = arith.constant 0 : index
    %17 = vector.load %arg6[%c0_8, %c0_9] : memref<8x128xf32, #tpu.memory_space<vmem>>, vector<8x128xf32>
    tpu.vector_store %arg6[%c0_8, %c0_9], %16 {strides = array<i32>} : memref<8x128xf32, #tpu.memory_space<vmem>>, vector<8x128xf32>,
    %c0_10 = arith.constant 0 : index
    %c0_11 = arith.constant 0 : index
    %18 = vector.load %arg5[%c0_10, %c0_11] : memref<8x128xf32, #tpu.memory_space<vmem>>, vector<8x128xf32>
    tpu.vector_store %arg5[%c0_10, %c0_11], %9 {strides = array<i32>} : memref<8x128xf32, #tpu.memory_space<vmem>>, vector<8x128xf32>,
    %19 = tpu.iota {dimensions = array<i32: 1>} : vector<8x128xi32>
    %cst = arith.constant 0.000000e+00 : f32
    %20 = vector.broadcast %cst : f32 to vector<8x128xf32>
    %c0_i32_12 = arith.constant 0 : i32
    %21 = vector.broadcast %c0_i32_12 : i32 to vector<8x1xi32>
    %22 = arith.subi %7, %21 : vector<8x1xi32>
    %23 = vector.broadcast %22 : vector<8x1xi32> to vector<8x128xi32>
    %24 = arith.cmpi eq, %19, %23 : vector<8x128xi32>
    %cst_13 = arith.constant 0.000000e+00 : f32
    %25 = vector.broadcast %cst_13 : f32 to vector<8x128xf32>
    %26 = arith.select %24, %3, %25 : vector<8x128xi1>, vector<8x128xf32>
    %27 = arith.addf %20, %26 : vector<8x128xf32>
    %c0_14 = arith.constant 0 : index
    %c0_15 = arith.constant 0 : index
    %28 = vector.load %arg7[%c0_14, %c0_15] : memref<8x128xf32, #tpu.memory_space<vmem>>, vector<8x128xf32>
    %29 = arith.addf %28, %27 : vector<8x128xf32>
    %c0_16 = arith.constant 0 : index
    %c0_17 = arith.constant 0 : index
    %30 = vector.load %arg7[%c0_16, %c0_17] : memref<8x128xf32, #tpu.memory_space<vmem>>, vector<8x128xf32>
    tpu.vector_store %arg7[%c0_16, %c0_17], %29 {strides = array<i32>} : memref<8x128xf32, #tpu.memory_space<vmem>>, vector<8x128xf32>,
    %c3_i32 = arith.constant 3 : i32
    %31 = arith.cmpi eq, %arg1, %c3_i32 : i32
    %32 = arith.extui %31 : i1 to i32
    %c0_i32_18 = arith.constant 0 : i32
    %33 = arith.cmpi ne, %32, %c0_i32_18 : i32
    scf.if %33 {
      %c0_19 = arith.constant 0 : index
      %c0_20 = arith.constant 0 : index
      %34 = vector.load %arg5[%c0_19, %c0_20] : memref<8x128xf32, #tpu.memory_space<vmem>>, vector<8x128xf32>
      %cst_21 = arith.constant dense<0xFF800000> : vector<8xf32>
      %35 = vector.multi_reduction <maximumf>, %34, %cst_21 [1] : vector<8x128xf32> to vector<8xf32>
      %36 = vector.shape_cast %35 : vector<8xf32> to vector<8x1xf32>
      %c0_22 = arith.constant 0 : index
      %c0_23 = arith.constant 0 : index
      %37 = vector.load %arg6[%c0_22, %c0_23] : memref<8x128xf32, #tpu.memory_space<vmem>>, vector<8x128xf32>
      %c0_24 = arith.constant 0 : index
      %c0_25 = arith.constant 0 : index
      %38 = vector.load %arg5[%c0_24, %c0_25] : memref<8x128xf32, #tpu.memory_space<vmem>>, vector<8x128xf32>
      %39 = vector.broadcast %36 : vector<8x1xf32> to vector<8x128xf32>
      %40 = arith.subf %38, %39 : vector<8x128xf32>
      %41 = math.exp %40 : vector<8x128xf32>
      %42 = arith.mulf %37, %41 : vector<8x128xf32>
      %cst_26 = arith.constant dense<0.000000e+00> : vector<8xf32>
      %43 = vector.multi_reduction <add>, %42, %cst_26 [1] : vector<8x128xf32> to vector<8xf32>
      %44 = vector.shape_cast %43 : vector<8xf32> to vector<8x1xf32>
      %45 = math.log %44 : vector<8x1xf32>
      %46 = arith.addf %36, %45 : vector<8x1xf32>
      %c0_27 = arith.constant 0 : index
      %c0_28 = arith.constant 0 : index
      %47 = vector.load %arg7[%c0_27, %c0_28] : memref<8x128xf32, #tpu.memory_space<vmem>>, vector<8x128xf32>
      %cst_29 = arith.constant dense<0.000000e+00> : vector<8xf32>
      %48 = vector.multi_reduction <add>, %47, %cst_29 [1] : vector<8x128xf32> to vector<8xf32>
      %49 = vector.shape_cast %48 : vector<8xf32> to vector<8x1xf32>
      %50 = arith.subf %46, %49 : vector<8x1xf32>
      %c0_30 = arith.constant 0 : index
      %c0_31 = arith.constant 0 : index
      %51 = vector.load %arg4[%c0_30, %c0_31] : memref<8x1xf32, #tpu.memory_space<vmem>>, vector<8x1xf32>
      tpu.vector_store %arg4[%c0_30, %c0_31], %50 {strides = array<i32>} : memref<8x1xf32, #tpu.memory_space<vmem>>, vector<8x1xf32>,
    } else {
    }
    return
  }
  func.func @transform_0(%arg0: i32, %arg1: i32) -> (i32, i32) {
    %c0_i32 = arith.constant 0 : i32
    return %arg0, %arg1 : i32, i32
  }
  func.func @transform_1(%arg0: i32, %arg1: i32) -> (i32, i32) {
    %c0_i32 = arith.constant 0 : i32
    %c0_i32_0 = arith.constant 0 : i32
    return %arg0, %c0_i32 : i32, i32
  }
  func.func @transform_2(%arg0: i32, %arg1: i32) -> (i32, i32) {
    %c0_i32 = arith.constant 0 : i32
    %c0_i32_0 = arith.constant 0 : i32
    return %arg0, %c0_i32 : i32, i32
  }
}

</mosaic_0001>

<llo_original>
// kernel: tpu_custom_call.1
$region0: #{tpu_custom_call.1}
  #allocation0 [shape = 'u32[]', space=smem, size = 0x4, offset = 0x4, fixed_abs, tag = 'smem constant byte address 0x4 - core index']
  #allocation1 [shape = 'u32[72,128]{1,0:T(1,128)}', space=vmem, size = 0x9000, scoped, tag = 'internal scratch']
  #allocation2 [shape = 'f32[8,128]{1,0:T(8,128)}', space=vmem, size = 0x1000, scoped, tag = 'scratch operand']
  #allocation3 [shape = 'f32[8,128]{1,0:T(8,128)}', space=vmem, size = 0x1000, scoped, tag = 'scratch operand']
  #allocation4 [shape = 'f32[8,128]{1,0:T(8,128)}', space=vmem, size = 0x1000, scoped, tag = 'scratch operand']
  %s0 = inlined_call_operand.hbm [shape: f32[16,512], index: 0, kind: input, shape index: {}]
  %s1 = inlined_call_operand.vmem [shape: s32[16,1], index: 1, kind: input, shape index: {}]
  %s2 = inlined_call_operand.vmem [shape: f32[16,1], index: 2, kind: output, shape index: {}]
  %s3 = sld [smem:[#allocation0]]
  $region53: #{tpu_custom_call.1} parent=0
    _
  %s5 = ssub.s32 1, %s3
  %s6 = scalar_select 0, %s5, %s3
  $region1: #{tpu_custom_call.1} parent=0
    #allocation5 [shape = 'u8[8192]{0}', space=vmem, size = 0x2000, scoped, tag = 'input window, operand 0']
    #allocation6 [shape = 's32[2]{0}', space=sflag, size = 0x8, scoped, tag = 'scoped memory for tpu_custom_call.1']
    %7 = vsyncpa [#allocation6], 0
    %s8 = scalar_lea.sflag [#allocation6], 1
    %9 = vsyncpa %s8, 0
    loop: start=0, step=1, limit=10
    $region2: #{tpu_custom_call.1} parent=1 // loop_pre_header
      _
    $region3: #{tpu_custom_call.1} parent=1 // loop_header
      %s11 = sphi 0, %s15
      %p12 = scmp.ge.s32.totalorder %s11, 10
      %s18 = sphi 0, %s30
      %s19 = sphi 0, %s26
      %s20 = sphi 0, %s18
      %s21 = sphi 0, %s19
      %s22 = sphi 0, %s20
      %s23 = sphi 0, %s21
      %s35 = sphi 0, %s37
      %s38 = sphi 0, %s35
      %s39 = sphi 0, %s38
      %s55 = sphi 0, %s39
      %s61 = sphi 0, %s63
      %s64 = sphi 0, %s61
      %s65 = sphi 0, %s64
      %s81 = sphi 0, %s65
      %s87 = sphi 0, %s89
      %s90 = sphi 0, %s87
      %s91 = sphi 0, %s90
      %s107 = sphi 0, %s91
    $region4: #{tpu_custom_call.1} parent=1 // loop_header_branch
      %14 = sbr.rel (%p12) target = $region8
    $region5: #{tpu_custom_call.1} parent=1 // loop_body
      %s16 = ssub.s32 %s11, 1
      %s17 = ssub.s32 %s11, 2
      %s24 = sadd.s32 1, %s19
      %p25 = scmp.ge.s32.totalorder %s24, 4
      %s26 = scalar_select %p25, 0, %s24
      %s27 = sadd.s32 1, %s18
      %s28 = scalar_select %p25, %s27, %s18
      %p29 = scmp.ge.s32.totalorder %s28, 2
      %s30 = scalar_select %p29, 0, %s28
      %s31 = ssub.s32 %s18, %s30
      %s32 = ssub.s32 %s19, %s26
      %s33 = sor.u32 %s31, %s32
      %p34 = scmp.eq.s32.totalorder %s33, 0
      %s36 = sadd.s32 %s35, 1
      %s37 = scalar_select %p34, %s35, %s36
      %p40 = pneg %p34
      %p41 = scmp.eq.s32.totalorder %s11, 7
      %p42 = por %p40, %p41
      %p43 = scmp.ne.s32.totalorder %s35, %s38
      %p44 = scmp.eq.s32.totalorder %s11, 0
      %p45 = por %p43, %p44
      %p46 = scmp.ne.s32.totalorder %s35, %s38
      %p47 = scmp.eq.s32.totalorder %s16, 7
      %p48 = por %p46, %p47
      %p49 = scmp.ne.s32.totalorder %s38, %s39
      %p50 = scmp.eq.s32.totalorder %s16, 0
      %p51 = por %p49, %p50
      %p52 = scmp.ne.s32.totalorder %s38, %s39
      %p53 = scmp.eq.s32.totalorder %s17, 7
      %p54 = por %p52, %p53
      %p56 = scmp.ne.s32.totalorder %s39, %s55
      %p57 = scmp.eq.s32.totalorder %s17, 0
      %p58 = por %p56, %p57
      %s59 = ssub.s32 %s18, %s30
      %p60 = scmp.eq.s32.totalorder %s59, 0
      %s62 = sadd.s32 %s61, 1
      %s63 = scalar_select %p60, %s61, %s62
      %p66 = pneg %p60
      %p67 = scmp.eq.s32.totalorder %s11, 7
      %p68 = por %p66, %p67
      %p69 = scmp.ne.s32.totalorder %s61, %s64
      %p70 = scmp.eq.s32.totalorder %s11, 0
      %p71 = por %p69, %p70
      %p72 = scmp.ne.s32.totalorder %s61, %s64
      %p73 = scmp.eq.s32.totalorder %s16, 7
      %p74 = por %p72, %p73
      %p75 = scmp.ne.s32.totalorder %s64, %s65
      %p76 = scmp.eq.s32.totalorder %s16, 0
      %p77 = por %p75, %p76
      %p78 = scmp.ne.s32.totalorder %s64, %s65
      %p79 = scmp.eq.s32.totalorder %s17, 7
      %p80 = por %p78, %p79
      %p82 = scmp.ne.s32.totalorder %s65, %s81
      %p83 = scmp.eq.s32.totalorder %s17, 0
      %p84 = por %p82, %p83
      %s85 = ssub.s32 %s18, %s30
      %p86 = scmp.eq.s32.totalorder %s85, 0
      %s88 = sadd.s32 %s87, 1
      %s89 = scalar_select %p86, %s87, %s88
      %p92 = pneg %p86
      %p93 = scmp.eq.s32.totalorder %s11, 7
      %p94 = por %p92, %p93
      %p95 = scmp.ne.s32.totalorder %s87, %s90
      %p96 = scmp.eq.s32.totalorder %s11, 0
      %p97 = por %p95, %p96
      %p98 = scmp.ne.s32.totalorder %s87, %s90
      %p99 = scmp.eq.s32.totalorder %s16, 7
      %p100 = por %p98, %p99
      %p101 = scmp.ne.s32.totalorder %s90, %s91
      %p102 = scmp.eq.s32.totalorder %s16, 0
      %p103 = por %p101, %p102
      %p104 = scmp.ne.s32.totalorder %s90, %s91
      %p105 = scmp.eq.s32.totalorder %s17, 7
      %p106 = por %p104, %p105
      %p108 = scmp.ne.s32.totalorder %s91, %s107
      %p109 = scmp.eq.s32.totalorder %s17, 0
      %p110 = por %p108, %p109
      %p111 = scmp.le.s32.totalorder 1, %s11
      %p112 = scmp.lt.s32.totalorder %s11, 9
      %p113 = pnand %p111, %p112
      %p114 = pneg %p113
      // Predicated region
      $region9: #{tpu_custom_call.1} parent=5 // pred_check
        _
      $region10: #{tpu_custom_call.1} parent=5 // pred_check_branch
        %116 = sbr.rel (%p113) target = $region12
      $region11: #{tpu_custom_call.1} parent=5 // pred_region
        %s117 = ssub.s32 %s11, 1
      $region12: #{tpu_custom_call.1} parent=5 // pred_fallthru
        _
      %p118 = scmp.lt.s32.totalorder %s11, 8
      // Predicated region
      $region13: #{tpu_custom_call.1} parent=5 // pred_check
        %p119 = pneg %p118
      $region14: #{tpu_custom_call.1} parent=5 // pred_check_branch
        %121 = sbr.rel (%p119) target = $region16
      $region15: #{tpu_custom_call.1} parent=5 // pred_region
        // Predicated region
        $region17: #{tpu_custom_call.1} parent=15 // pred_check
          %p122 = pneg %p45
        $region18: #{tpu_custom_call.1} parent=15 // pred_check_branch
          %124 = sbr.rel (%p122) target = $region20
        $region19: #{tpu_custom_call.1} parent=15 // pred_region
          %s125 = sand.u32 %s35, 1
          %s126 = scalar_lea.sflag [#allocation6], %s125
          %s127 = sand.u32 %s35, 1
          %s128 = smul.addr %s127, 8
          %s129 = scalar_lea.vmem [#allocation5], %s128
          %131 = vsyncadd %s126, 0
          %s132 = smul.addr %s18, 4
          %s133 = sadd.s32 %s19, %s132
          %s134 = smul.addr %s133, 8
          %s135 = scalar_lea.hbm %s0, %s134
          %s137 = sshll.u32 %s135, 4
          %s138 = int_to_ptr.hbm [resolvable:$true] %s137
          %s139 = sshll.u32 %s129, 4
          %s140 = int_to_ptr.vmem [resolvable:$true] %s139
          %142 = dma.hbm_to_vmem [thread:$0]  %s138, 128, %s140, %s126
        $region20: #{tpu_custom_call.1} parent=15 // pred_fallthru
          _
        // Predicated region
        $region21: #{tpu_custom_call.1} parent=15 // pred_check
          %p143 = pneg %p71
        $region22: #{tpu_custom_call.1} parent=15 // pred_check_branch
          %145 = sbr.rel (%p143) target = $region24
        $region23: #{tpu_custom_call.1} parent=15 // pred_region
          %p146 = scmp.lt.s32.totalorder %s18, 1
          %s147 = scalar_select %p146, %s18, 1
          %s148 = smul.addr %s147, 8
          %s149 = scalar_lea.vmem %s1, %s148
        $region24: #{tpu_custom_call.1} parent=15 // pred_fallthru
          _
      $region16: #{tpu_custom_call.1} parent=5 // pred_fallthru
        _
      %p150 = scmp.le.s32.totalorder 1, %s11
      %p151 = scmp.lt.s32.totalorder %s11, 9
      %p152 = pnand %p150, %p151
      %p153 = pneg %p152
      // Predicated region
      $region25: #{tpu_custom_call.1} parent=5 // pred_check
        _
      $region26: #{tpu_custom_call.1} parent=5 // pred_check_branch
        %155 = sbr.rel (%p152) target = $region28
      $region27: #{tpu_custom_call.1} parent=5 // pred_region
        %s156 = ssub.s32 %s11, 1
        %s157 = sand.u32 %s38, 1
        %s158 = scalar_lea.sflag [#allocation6], %s157
        %s159 = sand.u32 %s38, 1
        %s160 = smul.addr %s159, 8
        %s161 = scalar_lea.vmem [#allocation5], %s160
        // Predicated region
        $region29: #{tpu_custom_call.1} parent=27 // pred_check
          %p162 = pneg %p51
        $region30: #{tpu_custom_call.1} parent=27 // pred_check_branch
          %164 = sbr.rel (%p162) target = $region32
        $region31: #{tpu_custom_call.1} parent=27 // pred_region
          %166 = dma.done %s158, 128
        $region32: #{tpu_custom_call.1} parent=27 // pred_fallthru
          _
        %s167 = sand.u32 %s38, 1
        %s168 = scalar_lea.sflag [#allocation6], %s167
        %s169 = sand.u32 %s38, 1
        %s170 = smul.addr %s169, 8
        %s171 = scalar_lea.vmem [#allocation5], %s170
        %p172 = pneg %p51
        %p173 = pneg %p48
        %p174 = scmp.lt.s32.totalorder %s20, 1
        %s175 = scalar_select %p174, %s20, 1
        %s176 = smul.addr %s175, 8
        %s177 = scalar_lea.vmem %s1, %s176
        %p178 = pneg %p77
        %p179 = pneg %p74
        %p180 = pneg %p103
        %p181 = pneg %p100
        %p182 = scmp.lt.s32.totalorder %s20, 1
        %s183 = scalar_select %p182, %s20, 1
        %s184 = smul.addr %s183, 8
        %s185 = scalar_lea.vmem %s2, %s184
        %p186 = scmp.lt.s32.totalorder %s20, 1
        %s187 = scalar_select %p186, %s20, 1
        %s188 = smul.addr %s187, 8
        %s189 = scalar_lea.vmem %s1, %s188
        %p190 = scmp.lt.s32.totalorder %s20, 1
        %s191 = scalar_select %p190, %s20, 1
        %s192 = smul.addr %s191, 8
        %s193 = scalar_lea.vmem %s2, %s192
        %p194 = scmp.eq.s32.totalorder %s21, 0
        // Predicated region
        $region33: #{tpu_custom_call.1} parent=27 // pred_check
          %p195 = pneg %p194
        $region34: #{tpu_custom_call.1} parent=27 // pred_check_branch
          %197 = sbr.rel (%p195) target = $region36
        $region35: #{tpu_custom_call.1} parent=27 // pred_region
          %198 = vst [vmem:[#allocation2] sm:$0xff] -1e+30
          %199 = vst [vmem:[#allocation3] sm:$0xff] 0.0
          %200 = vst [vmem:[#allocation4] sm:$0xff] 0.0
        $region36: #{tpu_custom_call.1} parent=27 // pred_fallthru
          _
        %v201 = vld [vmem:[%s161] sm:$0xff]
        %v202 = vld [vmem:[%s189] sm:$0xff]
        %s203 = smul.u32 %s21, 128
        %v204 = vstv %s203
        %v205 = vsub.s32 %v202, %v204
        %v206 = vld [vmem:[#allocation2] sm:$0xff]
        %v207 = vmax.f32 %v206, %v201
        %v208 = vsub.f32 %v206, %v207
        %v209 = vmul.f32 %v208, 1.442695
        %v210 = vpow.pop %v209
        %v211 = vsub.f32 %v201, %v207
        %v212 = vmul.f32 %v211, 1.442695
        %v213 = vpow.pop %v212
        %v214 = vld [vmem:[#allocation3] sm:$0xff]
        %v215 = vmul.f32 %v214, %v210
        %v216 = vadd.f32 %v215, %v213
        %217 = vst [vmem:[#allocation3] sm:$0xff] %v216
        %218 = vst [vmem:[#allocation2] sm:$0xff] %v207
        %v219 = vlaneseq
        %v220 = vand.u32 %v219, 127
        %221 = vset.pattern.permute.xlu0 0
        %222 = vperm.xlu0 %221, %v205
        %v223 = vpop.permute.xlu0 %222
        %vm224 = vcmp.eq.s32.totalorder %v220, %v223
        %v225 = vsel %vm224, %v201, 0.0
        %v226 = vadd.f32 %v225, 0.0
        %v227 = vld [vmem:[#allocation4] sm:$0xff]
        %v228 = vadd.f32 %v227, %v226
        %229 = vst [vmem:[#allocation4] sm:$0xff] %v228
        %p230 = scmp.eq.s32.totalorder %s21, 3
        // Predicated region
        $region37: #{tpu_custom_call.1} parent=27 // pred_check
          %p231 = pneg %p230
        $region38: #{tpu_custom_call.1} parent=27 // pred_check_branch
          %233 = sbr.rel (%p231) target = $region40
        $region39: #{tpu_custom_call.1} parent=27 // pred_region
          %v234 = vld [vmem:[#allocation2] sm:$0xff]
          %235 = vmax.xlane.f32.xlu0 %v234
          %v236 = vpop.xlane.xlu0 %235
          %v237 = vld [vmem:[#allocation3] sm:$0xff]
          %v238 = vsub.f32 %v234, %v236
          %v239 = vmul.f32 %v238, 1.442695
          %v240 = vpow.pop %v239
          %v241 = vmul.f32 %v237, %v240
          %242 = vadd.xlane.f32.xlu0 %v241
          %v243 = vpop.xlane.xlu0 %242
          %v244 = vlog2.pop %v243
          %v245 = vmul.f32 %v244, 0.6931472
          %v246 = vadd.f32 %v236, %v245
          %v247 = vld [vmem:[#allocation4] sm:$0xff]
          %248 = vadd.xlane.f32.xlu0 %v247
          %v249 = vpop.xlane.xlu0 %248
          %v250 = vsub.f32 %v246, %v249
          %vm251 = vcmask 7168
          %252 = vst.msk [vmem:[%s193] sm:$0xff] %vm251, %v250
        $region40: #{tpu_custom_call.1} parent=27 // pred_fallthru
          _
        %p253 = scmp.lt.s32.totalorder %s20, 1
        %s254 = scalar_select %p253, %s20, 1
        %s255 = smul.addr %s254, 8
        %s256 = scalar_lea.vmem %s2, %s255
        // Predicated region
        $region41: #{tpu_custom_call.1} parent=27 // pred_check
          %p257 = pneg %p100
        $region42: #{tpu_custom_call.1} parent=27 // pred_check_branch
          %259 = sbr.rel (%p257) target = $region44
        $region43: #{tpu_custom_call.1} parent=27 // pred_region
          _
        $region44: #{tpu_custom_call.1} parent=27 // pred_fallthru
          _
      $region28: #{tpu_custom_call.1} parent=5 // pred_fallthru
        _
      %p260 = scmp.le.s32.totalorder 2, %s11
      // Predicated region
      $region45: #{tpu_custom_call.1} parent=5 // pred_check
        %p261 = pneg %p260
      $region46: #{tpu_custom_call.1} parent=5 // pred_check_branch
        %263 = sbr.rel (%p261) target = $region48
      $region47: #{tpu_custom_call.1} parent=5 // pred_region
        %s264 = ssub.s32 %s11, 2
        // Predicated region
        $region49: #{tpu_custom_call.1} parent=47 // pred_check
          %p265 = pneg %p106
        $region50: #{tpu_custom_call.1} parent=47 // pred_check_branch
          %267 = sbr.rel (%p265) target = $region52
        $region51: #{tpu_custom_call.1} parent=47 // pred_region
          %p268 = scmp.lt.s32.totalorder %s22, 1
          %s269 = scalar_select %p268, %s22, 1
          %s270 = smul.addr %s269, 8
          %s271 = scalar_lea.vmem %s2, %s270
        $region52: #{tpu_custom_call.1} parent=47 // pred_fallthru
          _
      $region48: #{tpu_custom_call.1} parent=5 // pred_fallthru
        _
    $region6: #{tpu_custom_call.1} parent=1 // loop_footer
      %s15 = sadd.s32 1, %s11
    $region7: #{tpu_custom_call.1} parent=1 // loop_footer_branch
      %10 = sbr.rel target = $region3
    $region8: #{tpu_custom_call.1} parent=1 // loop_exit
      _
    %272 = vsyncpa [#allocation6], 1
    %s273 = scalar_lea.sflag [#allocation6], 1
    %274 = vsyncpa %s273, 1

</llo_original>
